<compile_context>
chip_gen: v7x
topology: tpu7x:2x2x1
jax: 0.10.0
libtpu: 0.0.40
codegen_flags: <defaults>
</compile_context>

<pallas_src>
import functools

import jax
import jax.numpy as jnp
from jax import lax
from jax.experimental import pallas as pl
from jax.experimental.pallas import tpu as pltpu

_LANE = 128
_SUBLANE = 8

# Single-shot (gridless) path only for genuinely tiny problems; larger ones go
# through the tiled path so they get pipelining and (on v7x) both TensorCores.
_SINGLE_SHOT_BUDGET = 2 * 1024 * 1024

_VMEM_LIMIT_CACHE = None


def _round_up(a, b):
    return (a + b - 1) // b * b


def _vmem_limit_bytes():
    """Generation-aware VMEM limit: ~55% of physical per-core VMEM."""
    global _VMEM_LIMIT_CACHE
    if _VMEM_LIMIT_CACHE is None:
        cap = 64 * 1024 * 1024  # conservative default = v7x per-TC VMEM
        try:
            cap = int(pltpu.get_tpu_info().vmem_capacity_bytes)
        except Exception:
            pass
        _VMEM_LIMIT_CACHE = max(int(cap * 0.55), 16 * 1024 * 1024)
    return _VMEM_LIMIT_CACHE


def _linear_single_kernel(x_ref, w_ref, b_ref, o_ref):
    """Whole problem in one block: out = x @ W.T + b (W kept as (N, K))."""
    o_ref[...] = lax.dot_general(
        x_ref[...], w_ref[...],
        dimension_numbers=(((1,), (1,)), ((), ())),   # contract K against K
        preferred_element_type=jnp.float32,
    ) + b_ref[...]


def _linear_tiled_kernel(x_ref, w_ref, b_ref, o_ref):
    """Grid = (M tiles, N tiles, K tiles). The f32 output block is resident
    across the trailing K axis and is initialized with the bias at k == 0."""
    k = pl.program_id(2)

    @pl.when(k == 0)
    def _():
        o_ref[...] = jnp.broadcast_to(b_ref[...], o_ref.shape)

    o_ref[...] += lax.dot_general(
        x_ref[...], w_ref[...],
        dimension_numbers=(((1,), (1,)), ((), ())),   # contract K against K
        preferred_element_type=jnp.float32,
    )


@functools.partial(
    jax.jit,
    static_argnames=("single_shot_budget_bytes", "tile_m", "tile_n", "tile_k"),
)
def logistic_regression_forward(
    x, weight, bias, *,
    single_shot_budget_bytes=_SINGLE_SHOT_BUDGET,
    tile_m=None, tile_n=None, tile_k=None,
):
    """out = x @ weight.T + bias.

    x:      (M, K) float32
    weight: (N, K) float32  (PyTorch nn.Linear layout: (out_features, in_features))
    bias:   (N,)   float32
    """
    M, K = x.shape
    N, Kw = weight.shape
    assert Kw == K, "weight must be (out_features, in_features)"

    x = x.astype(jnp.float32)
    w = weight.astype(jnp.float32)                 # keep (N, K): no transpose
    b2d = bias.astype(jnp.float32).reshape(1, N)

    vmem_limit = _vmem_limit_bytes()

    # ---------------- single-shot path (tiny problems) ----------------
    single_bytes = 4 * (M * K + N * K + M * N + N)
    if single_bytes <= min(single_shot_budget_bytes, vmem_limit // 4):
        return pl.pallas_call(
            _linear_single_kernel,
            out_shape=jax.ShapeDtypeStruct((M, N), jnp.float32),
            in_specs=[
                pl.BlockSpec((M, K), lambda: (0, 0)),   # x      (whole array)
                pl.BlockSpec((N, K), lambda: (0, 0)),   # weight (whole array)
                pl.BlockSpec((1, N), lambda: (0, 0)),   # bias
            ],
            out_specs=pl.BlockSpec((M, N), lambda: (0, 0)),
            compiler_params=pltpu.CompilerParams(vmem_limit_bytes=vmem_limit),
        )(x, w, b2d)

    # ---------------- tiled path ----------------
    budget = int(vmem_limit * 0.6)   # headroom for Mosaic internal scratch

    # N tile: full N when small (possibly non-128 -> masked vst, fine), else 512.
    if tile_n is not None:
        tn = tile_n
    else:
        tn = N if N <= 512 else 512

    # K tile: pad K only to a lane multiple, then pick the largest K tile
    # (multiple of 128, bounded by the VMEM budget) that divides padded K.
    k_pad = _round_up(K, _LANE)
    if tile_k is not None:
        tk = tile_k
        k_pad = _round_up(K, tk)
    else:
        tk_target = _LANE
        for cand in (2048, 1024, 512, 256, 128):
            if 2 * cand * max(tn, _LANE) * 4 <= budget // 2:
                tk_target = cand
                break
        tk = min(tk_target, k_pad)
        while k_pad % tk:
            tk -= _LANE

    # M tile: no padding of x along M; grow tm against the VMEM budget
    # (bigger M tiles amortize per-step overhead and W re-streaming).
    m_cap = _round_up(M, _SUBLANE)
    if tile_m is not None:
        tm = tile_m
    else:
        tm = min(128, m_cap)
        for cand in (2048, 1024, 512, 256, 128):
            cand_m = min(cand, m_cap)
            need = 4 * (2 * cand_m * tk + 2 * tk * tn + 2 * cand_m * tn + 2 * tn)
            if need <= budget:
                tm = cand_m
                break

    # Zero-pad only the K (contraction) axis -- garbage there would corrupt
    # valid outputs, unlike partial M/N blocks which Pallas clips on writeback.
    if k_pad != K:
        x = jnp.pad(x, ((0, 0), (0, k_pad - K)))
        w = jnp.pad(w, ((0, 0), (0, k_pad - K)))

    grid = (pl.cdiv(M, tm), pl.cdiv(N, tn), k_pad // tk)

    return pl.pallas_call(
        _linear_tiled_kernel,
        out_shape=jax.ShapeDtypeStruct((M, N), jnp.float32),
        grid=grid,
        in_specs=[
            pl.BlockSpec((tm, tk), lambda i, j, k: (i, k)),   # x tile
            pl.BlockSpec((tn, tk), lambda i, j, k: (j, k)),   # weight tile (N,K)
            pl.BlockSpec((1, tn), lambda i, j, k: (0, j)),    # bias tile
        ],
        out_specs=pl.BlockSpec((tm, tn), lambda i, j, k: (i, j)),
        compiler_params=pltpu.CompilerParams(
            dimension_semantics=("parallel", "parallel", "arbitrary"),
            vmem_limit_bytes=vmem_limit,
        ),
    )(x, w, b2d)


if __name__ == "__main__":
    # Shapes consistent with the module:
    #   model_specs['input_size']  -> number of input genes (K)
    #   model_specs['output_size'] -> number of classes (N)
    #   model_specs['batch_size']  -> 64
    batch, input_size, output_size = 64, 512, 16

    key = jax.random.PRNGKey(0)
    kx, kw, kb = jax.random.split(key, 3)

    # Deterministic init mirroring nn.Linear's default U(-1/sqrt(in), +1/sqrt(in)).
    bound = 1.0 / jnp.sqrt(jnp.float32(input_size))
    weight = jax.random.uniform(
        kw, (output_size, input_size), jnp.float32, -bound, bound
    )  # PyTorch layout (out_features, in_features)
    bias = jax.random.uniform(kb, (output_size,), jnp.float32, -bound, bound)
    x = jax.random.normal(kx, (batch, input_size), jnp.float32)

    # Reference uses the same default MXU matmul precision as the kernel; the
    # loose tolerance only guards against any precision-mode mismatch.
    ref = x @ weight.T + bias
    TOL = dict(atol=1e-2, rtol=1e-2)

    # 1) default: tiny shape takes the single-shot (gridless, no-pad) path.
    out = jax.block_until_ready(logistic_regression_forward(x, weight, bias))
    assert out.shape == (batch, output_size)
    assert jnp.allclose(out, ref, **TOL), "single-shot path mismatch"

    # 2) force the tiled (M,N,K)-grid path on the same shapes, with small
    #    tiles so K accumulation, bias init, and a partial final M block are
    #    all exercised.
    out_tiled = jax.block_until_ready(
        logistic_regression_forward(
            x, weight, bias,
            single_shot_budget_bytes=0, tile_m=48, tile_n=16, tile_k=128,
        )
    )
    assert out_tiled.shape == (batch, output_size)
    assert jnp.allclose(out_tiled, ref, **TOL), "tiled (forced tiles) mismatch"

    # 3) tiled path with auto tile selection on non-aligned K/N (exercises the
    #    K pad-to-128 and the non-128 output tile).
    M2, K2, N2 = 72, 200, 24
    x2 = jax.random.normal(jax.random.PRNGKey(1), (M2, K2), jnp.float32)
    w2 = jax.random.uniform(jax.random.PRNGKey(2), (N2, K2), jnp.float32, -0.1, 0.1)
    b2 = jax.random.uniform(jax.random.PRNGKey(3), (N2,), jnp.float32, -0.1, 0.1)
    ref2 = x2 @ w2.T + b2
    out2 = jax.block_until_ready(
        logistic_regression_forward(x2, w2, b2, single_shot_budget_bytes=0)
    )
    assert out2.shape == (M2, N2)
    assert jnp.allclose(out2, ref2, **TOL), "tiled (auto tiles) mismatch"

    print("KERNEL_OK")
</pallas_src>

<mosaic_0001>
module attributes {stable_mosaic.version = 11 : i64} {
  func.func @_linear_single_kernel(%arg0: memref<64x512xf32, #tpu.memory_space<vmem>>, %arg1: memref<16x512xf32, #tpu.memory_space<vmem>>, %arg2: memref<1x16xf32, #tpu.memory_space<vmem>>, %arg3: memref<64x16xf32, #tpu.memory_space<vmem>>) attributes {dimension_semantics = [], scalar_prefetch = 0 : i64, scratch_operands = 0 : i64, tpu.core_type = #tpu.core_type<tc>} {
    %c0 = arith.constant 0 : index
    %c0_0 = arith.constant 0 : index
    %0 = vector.load %arg0[%c0, %c0_0] : memref<64x512xf32, #tpu.memory_space<vmem>>, vector<64x512xf32>
    %c0_1 = arith.constant 0 : index
    %c0_2 = arith.constant 0 : index
    %1 = vector.load %arg1[%c0_1, %c0_2] : memref<16x512xf32, #tpu.memory_space<vmem>>, vector<16x512xf32>
    %cst = arith.constant dense<0.000000e+00> : vector<64x16xf32>
    %2 = tpu.matmul %0, %1, %cst {dimension_numbers = #tpu.dot_dimension_numbers<[1], [1], [0], [0], [0, 0, 1, 0], [], []>} : vector<64x512xf32>, vector<16x512xf32>, vector<64x16xf32> -> vector<64x16xf32>
    %c0_3 = arith.constant 0 : index
    %c0_4 = arith.constant 0 : index
    %3 = vector.load %arg2[%c0_3, %c0_4] : memref<1x16xf32, #tpu.memory_space<vmem>>, vector<1x16xf32>
    %4 = vector.broadcast %3 : vector<1x16xf32> to vector<64x16xf32>
    %5 = arith.addf %2, %4 : vector<64x16xf32>
    %c0_5 = arith.constant 0 : index
    %c0_6 = arith.constant 0 : index
    %6 = vector.load %arg3[%c0_5, %c0_6] : memref<64x16xf32, #tpu.memory_space<vmem>>, vector<64x16xf32>
    tpu.vector_store %arg3[%c0_5, %c0_6], %5 {strides = array<i32>} : memref<64x16xf32, #tpu.memory_space<vmem>>, vector<64x16xf32>,
    return
  }
}

</mosaic_0001>

<llo_original>
// kernel: logistic_regression_forward.1
$region0: #{logistic_regression_forward.1}
  #allocation0 [shape = 'u32[]', space=smem, size = 0x4, offset = 0x4, fixed_abs, tag = 'smem constant byte address 0x4 - core index']
  #allocation1 [shape = 'u32[144,128]{1,0:T(1,128)}', space=vmem, size = 0x12000, scoped, tag = 'internal scratch']
  %s0 = inlined_call_operand.hbm [shape: f32[64,512], index: 0, kind: input, shape index: {}]
  %s1 = inlined_call_operand.hbm [shape: f32[16,512], index: 1, kind: input, shape index: {}]
  %s2 = inlined_call_operand.vmem [shape: f32[1,16], index: 2, kind: input, shape index: {}]
  %s3 = inlined_call_operand.vmem [shape: f32[64,16], index: 3, kind: output, shape index: {}]
  %s4 = sld [smem:[#allocation0]]
  $region30: #{logistic_regression_forward.1} parent=0
    _
  %s6 = ssub.s32 1, %s4
  %s7 = scalar_select 0, %s6, %s4
  $region1: #{logistic_regression_forward.1} parent=0
    #allocation2 [shape = 'u8[131072]{0}', space=vmem, size = 0x20000, scoped, tag = 'input window, operand 0, single buffered']
    #allocation3 [shape = 's32[1]{0}', space=sflag, size = 0x4, scoped, tag = 'scoped memory for logistic_regression_forward.1']
    #allocation4 [shape = 'u8[32768]{0}', space=vmem, size = 0x8000, scoped, tag = 'input window, operand 1, single buffered']
    #allocation5 [shape = 's32[1]{0}', space=sflag, size = 0x4, scoped, tag = 'scoped memory for logistic_regression_forward.1']
    %8 = vsyncpa [#allocation3], 0
    %9 = vsyncpa [#allocation5], 0
    // Predicated region
    $region2: #{logistic_regression_forward.1} parent=1 // pred_check
      _
    $region3: #{logistic_regression_forward.1} parent=1 // pred_check_branch
      %11 = sbr.rel (0) target = $region5
    $region4: #{logistic_regression_forward.1} parent=1 // pred_region
      %s13 = ssub.s32 4096, 4096
      %14 = vsyncadd [#allocation3], %s13
      %s15 = sshll.u32 [#allocation2], 4
      %s16 = int_to_ptr.vmem [resolvable:$true] %s15
      %21 = dma.hbm_to_vmem [thread:$0]  %s0, 4096, %s16, [#allocation3], 512, 512, 32
    $region5: #{logistic_regression_forward.1} parent=1 // pred_fallthru
      _
    // Predicated region
    $region6: #{logistic_regression_forward.1} parent=1 // pred_check
      _
    $region7: #{logistic_regression_forward.1} parent=1 // pred_check_branch
      %23 = sbr.rel (0) target = $region9
    $region8: #{logistic_regression_forward.1} parent=1 // pred_region
      %s25 = ssub.s32 1024, 1024
      %26 = vsyncadd [#allocation5], %s25
      %s27 = sshll.u32 [#allocation4], 4
      %s28 = int_to_ptr.vmem [resolvable:$true] %s27
      %33 = dma.hbm_to_vmem [thread:$0]  %s1, 1024, %s28, [#allocation5], 512, 512, 32
    $region9: #{logistic_regression_forward.1} parent=1 // pred_fallthru
      _
    // Predicated region
    $region10: #{logistic_regression_forward.1} parent=1 // pred_check
      _
    $region11: #{logistic_regression_forward.1} parent=1 // pred_check_branch
      %35 = sbr.rel (0) target = $region13
    $region12: #{logistic_regression_forward.1} parent=1 // pred_region
      _
    $region13: #{logistic_regression_forward.1} parent=1 // pred_fallthru
      _
    // Predicated region
    $region14: #{logistic_regression_forward.1} parent=1 // pred_check
      _
    $region15: #{logistic_regression_forward.1} parent=1 // pred_check_branch
      %37 = sbr.rel (0) target = $region17
    $region16: #{logistic_regression_forward.1} parent=1 // pred_region
      %38 = dma.done [#allocation3], 4096
    $region17: #{logistic_regression_forward.1} parent=1 // pred_fallthru
      _
    // Predicated region
    $region18: #{logistic_regression_forward.1} parent=1 // pred_check
      _
    $region19: #{logistic_regression_forward.1} parent=1 // pred_check_branch
      %40 = sbr.rel (0) target = $region21
    $region20: #{logistic_regression_forward.1} parent=1 // pred_region
      %41 = dma.done [#allocation5], 1024
    $region21: #{logistic_regression_forward.1} parent=1 // pred_fallthru
      _
    %v42 = vld [vmem:[#allocation2] sm:$0xff]
    %v43 = vld [vmem:[#allocation2 + $0x8] sm:$0xff]
    %v44 = vld [vmem:[#allocation2 + $0x10] sm:$0xff]
    %v45 = vld [vmem:[#allocation2 + $0x18] sm:$0xff]
    %v46 = vld [vmem:[#allocation2 + $0x20] sm:$0xff]
    %v47 = vld [vmem:[#allocation2 + $0x28] sm:$0xff]
    %v48 = vld [vmem:[#allocation2 + $0x30] sm:$0xff]
    %v49 = vld [vmem:[#allocation2 + $0x38] sm:$0xff]
    %v50 = vld [vmem:[#allocation2 + $0x40] sm:$0xff]
    %v51 = vld [vmem:[#allocation2 + $0x48] sm:$0xff]
    %v52 = vld [vmem:[#allocation2 + $0x50] sm:$0xff]
    %v53 = vld [vmem:[#allocation2 + $0x58] sm:$0xff]
    %v54 = vld [vmem:[#allocation2 + $0x60] sm:$0xff]
    %v55 = vld [vmem:[#allocation2 + $0x68] sm:$0xff]
    %v56 = vld [vmem:[#allocation2 + $0x70] sm:$0xff]
    %v57 = vld [vmem:[#allocation2 + $0x78] sm:$0xff]
    %v58 = vld [vmem:[#allocation2 + $0x80] sm:$0xff]
    %v59 = vld [vmem:[#allocation2 + $0x88] sm:$0xff]
    %v60 = vld [vmem:[#allocation2 + $0x90] sm:$0xff]
    %v61 = vld [vmem:[#allocation2 + $0x98] sm:$0xff]
    %v62 = vld [vmem:[#allocation2 + $0xa0] sm:$0xff]
    %v63 = vld [vmem:[#allocation2 + $0xa8] sm:$0xff]
    %v64 = vld [vmem:[#allocation2 + $0xb0] sm:$0xff]
    %v65 = vld [vmem:[#allocation2 + $0xb8] sm:$0xff]
    %v66 = vld [vmem:[#allocation2 + $0xc0] sm:$0xff]
    %v67 = vld [vmem:[#allocation2 + $0xc8] sm:$0xff]
    %v68 = vld [vmem:[#allocation2 + $0xd0] sm:$0xff]
    %v69 = vld [vmem:[#allocation2 + $0xd8] sm:$0xff]
    %v70 = vld [vmem:[#allocation2 + $0xe0] sm:$0xff]
    %v71 = vld [vmem:[#allocation2 + $0xe8] sm:$0xff]
    %v72 = vld [vmem:[#allocation2 + $0xf0] sm:$0xff]
    %v73 = vld [vmem:[#allocation2 + $0xf8] sm:$0xff]
    %v74 = vld [vmem:[#allocation4] sm:$0xff]
    %v75 = vld [vmem:[#allocation4 + $0x8] sm:$0xff]
    %v76 = vld [vmem:[#allocation4 + $0x10] sm:$0xff]
    %v77 = vld [vmem:[#allocation4 + $0x18] sm:$0xff]
    %v78 = vld [vmem:[#allocation4 + $0x20] sm:$0xff]
    %v79 = vld [vmem:[#allocation4 + $0x28] sm:$0xff]
    %v80 = vld [vmem:[#allocation4 + $0x30] sm:$0xff]
    %v81 = vld [vmem:[#allocation4 + $0x38] sm:$0xff]
    %v82 = vld [vmem:[%s2] sm:$0x1]
    %v84 = vlaneseq
    %v85 = vshrl.u32 %v84, 7
    %v86 = vsub.s32 0, %v85
    %v87 = vrot.slane %v82, %v86
    %89 = vmatprep.subr.mxu0 %v75
    %90 = vmatpush1.xpose.msra.mxu0 %v74
    %91 = vmatprep.subr.mxu0 %v79
    %92 = vmatpush1.xpose.msra.mxu0 %v78
    %93 = vmatprep.subr.mxu0 0.0
    %94 = vmatpush1.xpose.msra.mxu0 0.0
    %95 = vmatprep.subr.mxu0 0.0
    %96 = vmatpush1.xpose.msra.mxu0 0.0
    %97 = vmatprep.subr.mxu0 0.0
    %98 = vmatpush1.xpose.msra.mxu0 0.0
    %99 = vmatprep.subr.mxu0 0.0
    %100 = vmatpush1.xpose.msra.mxu0 0.0
    %101 = vmatprep.subr.mxu0 0.0
    %102 = vmatpush1.xpose.msra.mxu0 0.0
    %103 = vmatprep.subr.mxu0 0.0
    %104 = vmatpush1.xpose.msra.mxu0 0.0
    %105 = vmatprep.subr.mxu0 0.0
    %106 = vmatpush1.xpose.msra.mxu0 0.0
    %107 = vmatprep.subr.mxu0 0.0
    %108 = vmatpush1.xpose.msra.mxu0 0.0
    %109 = vmatprep.subr.mxu0 0.0
    %110 = vmatpush1.xpose.msra.mxu0 0.0
    %111 = vmatprep.subr.mxu0 0.0
    %112 = vmatpush1.xpose.msra.mxu0 0.0
    %113 = vmatprep.subr.mxu0 0.0
    %114 = vmatpush1.xpose.msra.mxu0 0.0
    %115 = vmatprep.subr.mxu0 0.0
    %116 = vmatpush1.xpose.msra.mxu0 0.0
    %117 = vmatprep.subr.mxu0 0.0
    %118 = vmatpush1.xpose.msra.mxu0 0.0
    %119 = vmatprep.subr.mxu0 0.0
    %120 = vmatpush1.xpose.msra.mxu0 0.0
    %121 = vmatprep.subr.mxu0 0.0
    %122 = vmatpush1.xpose.msra.mxu0 0.0
    %123 = vmatprep.subr.mxu0 0.0
    %124 = vmatpush1.xpose.msra.mxu0 0.0
    %125 = vmatprep.subr.mxu0 0.0
    %126 = vmatpush1.xpose.msra.mxu0 0.0
    %127 = vmatprep.subr.mxu0 0.0
    %128 = vmatpush1.xpose.msra.mxu0 0.0
    %129 = vmatprep.subr.mxu0 0.0
    %130 = vmatpush1.xpose.msra.mxu0 0.0
    %131 = vmatprep.subr.mxu0 0.0
    %132 = vmatpush1.xpose.msra.mxu0 0.0
    %133 = vmatprep.subr.mxu0 0.0
    %134 = vmatpush1.xpose.msra.mxu0 0.0
    %135 = vmatprep.subr.mxu0 0.0
    %136 = vmatpush1.xpose.msra.mxu0 0.0
    %137 = vmatprep.subr.mxu0 0.0
    %138 = vmatpush1.xpose.msra.mxu0 0.0
    %139 = vmatprep.subr.mxu0 0.0
    %140 = vmatpush1.xpose.msra.mxu0 0.0
    %141 = vmatprep.subr.mxu0 0.0
    %142 = vmatpush1.xpose.msra.mxu0 0.0
    %143 = vmatprep.subr.mxu0 0.0
    %144 = vmatpush1.xpose.msra.mxu0 0.0
    %145 = vmatprep.subr.mxu0 0.0
    %146 = vmatpush1.xpose.msra.mxu0 0.0
    %147 = vmatprep.subr.mxu0 0.0
    %148 = vmatpush1.xpose.msra.mxu0 0.0
    %149 = vmatprep.subr.mxu0 0.0
    %150 = vmatpush1.xpose.msra.mxu0 0.0
    %151 = vmatprep.subr.mxu0 0.0
    %152 = vmatpush1.xpose.msra.mxu0 0.0
    %153 = vmatprep.mubr.f32.mxu0 %v43
    %154 = vmatmul.mubr.f32.gmra.mrb[0].mxu0 %v42
    %v155 = vpop.f32.mrb[0].mxu0
    %v156 = vadd.f32 %v87, %v155
    %v157 = vpop.f32.mrb[0].mxu0
    %158 = vmatprep.mubr.f32.mxu0 %v47
    %159 = vmatmul.mubr.f32.gmra.mrb[0].mxu0 %v46
    %v160 = vpop.f32.mrb[0].mxu0
    %v161 = vadd.f32 %v87, %v160
    %v162 = vpop.f32.mrb[0].mxu0
    %163 = vmatprep.mubr.f32.mxu0 %v51
    %164 = vmatmul.mubr.f32.gmra.mrb[0].mxu0 %v50
    %v165 = vpop.f32.mrb[0].mxu0
    %v166 = vadd.f32 %v87, %v165
    %v167 = vpop.f32.mrb[0].mxu0
    %168 = vmatprep.mubr.f32.mxu0 %v55
    %169 = vmatmul.mubr.f32.gmra.mrb[0].mxu0 %v54
    %v170 = vpop.f32.mrb[0].mxu0
    %v171 = vadd.f32 %v87, %v170
    %v172 = vpop.f32.mrb[0].mxu0
    %173 = vmatprep.mubr.f32.mxu0 %v59
    %174 = vmatmul.mubr.f32.gmra.mrb[0].mxu0 %v58
    %v175 = vpop.f32.mrb[0].mxu0
    %v176 = vadd.f32 %v87, %v175
    %v177 = vpop.f32.mrb[0].mxu0
    %178 = vmatprep.mubr.f32.mxu0 %v63
    %179 = vmatmul.mubr.f32.gmra.mrb[0].mxu0 %v62
    %v180 = vpop.f32.mrb[0].mxu0
    %v181 = vadd.f32 %v87, %v180
    %v182 = vpop.f32.mrb[0].mxu0
    %183 = vmatprep.mubr.f32.mxu0 %v67
    %184 = vmatmul.mubr.f32.gmra.mrb[0].mxu0 %v66
    %v185 = vpop.f32.mrb[0].mxu0
    %v186 = vadd.f32 %v87, %v185
    %v187 = vpop.f32.mrb[0].mxu0
    %188 = vmatprep.mubr.f32.mxu0 %v71
    %189 = vmatmul.mubr.f32.gmra.mrb[0].mxu0 %v70
    %v190 = vpop.f32.mrb[0].mxu0
    %v191 = vadd.f32 %v87, %v190
    %v192 = vpop.f32.mrb[0].mxu0
    %193 = vdwg.mxu0
    %194 = vmatprep.subr.mxu0 %v77
    %195 = vmatpush1.xpose.msra.mxu0 %v76
    %196 = vmatprep.subr.mxu0 %v81
    %197 = vmatpush1.xpose.msra.mxu0 %v80
    %198 = vmatprep.subr.mxu0 0.0
    %199 = vmatpush1.xpose.msra.mxu0 0.0
    %200 = vmatprep.subr.mxu0 0.0
    %201 = vmatpush1.xpose.msra.mxu0 0.0
    %202 = vmatprep.subr.mxu0 0.0
    %203 = vmatpush1.xpose.msra.mxu0 0.0
    %204 = vmatprep.subr.mxu0 0.0
    %205 = vmatpush1.xpose.msra.mxu0 0.0
    %206 = vmatprep.subr.mxu0 0.0
    %207 = vmatpush1.xpose.msra.mxu0 0.0
    %208 = vmatprep.subr.mxu0 0.0
    %209 = vmatpush1.xpose.msra.mxu0 0.0
    %210 = vmatprep.subr.mxu0 0.0
    %211 = vmatpush1.xpose.msra.mxu0 0.0
    %212 = vmatprep.subr.mxu0 0.0
    %213 = vmatpush1.xpose.msra.mxu0 0.0
    %214 = vmatprep.subr.mxu0 0.0
    %215 = vmatpush1.xpose.msra.mxu0 0.0
    %216 = vmatprep.subr.mxu0 0.0
    %217 = vmatpush1.xpose.msra.mxu0 0.0
    %218 = vmatprep.subr.mxu0 0.0
    %219 = vmatpush1.xpose.msra.mxu0 0.0
    %220 = vmatprep.subr.mxu0 0.0
    %221 = vmatpush1.xpose.msra.mxu0 0.0
    %222 = vmatprep.subr.mxu0 0.0
    %223 = vmatpush1.xpose.msra.mxu0 0.0
    %224 = vmatprep.subr.mxu0 0.0
    %225 = vmatpush1.xpose.msra.mxu0 0.0
    %226 = vmatprep.subr.mxu0 0.0
    %227 = vmatpush1.xpose.msra.mxu0 0.0
    %228 = vmatprep.subr.mxu0 0.0
    %229 = vmatpush1.xpose.msra.mxu0 0.0
    %230 = vmatprep.subr.mxu0 0.0
    %231 = vmatpush1.xpose.msra.mxu0 0.0
    %232 = vmatprep.subr.mxu0 0.0
    %233 = vmatpush1.xpose.msra.mxu0 0.0
    %234 = vmatprep.subr.mxu0 0.0
    %235 = vmatpush1.xpose.msra.mxu0 0.0
    %236 = vmatprep.subr.mxu0 0.0
    %237 = vmatpush1.xpose.msra.mxu0 0.0
    %238 = vmatprep.subr.mxu0 0.0
    %239 = vmatpush1.xpose.msra.mxu0 0.0
    %240 = vmatprep.subr.mxu0 0.0
    %241 = vmatpush1.xpose.msra.mxu0 0.0
    %242 = vmatprep.subr.mxu0 0.0
    %243 = vmatpush1.xpose.msra.mxu0 0.0
    %244 = vmatprep.subr.mxu0 0.0
    %245 = vmatpush1.xpose.msra.mxu0 0.0
    %246 = vmatprep.subr.mxu0 0.0
    %247 = vmatpush1.xpose.msra.mxu0 0.0
    %248 = vmatprep.subr.mxu0 0.0
    %249 = vmatpush1.xpose.msra.mxu0 0.0
    %250 = vmatprep.subr.mxu0 0.0
    %251 = vmatpush1.xpose.msra.mxu0 0.0
    %252 = vmatprep.subr.mxu0 0.0
    %253 = vmatpush1.xpose.msra.mxu0 0.0
    %254 = vmatprep.subr.mxu0 0.0
    %255 = vmatpush1.xpose.msra.mxu0 0.0
    %256 = vmatprep.subr.mxu0 0.0
    %257 = vmatpush1.xpose.msra.mxu0 0.0
    %258 = vmatprep.mubr.f32.mxu0 %v45
    %259 = vmatmul.mubr.f32.gmra.mrb[0].mxu0 %v44
    %v260 = vpop.f32.mrb[0].mxu0
    %v261 = vadd.f32 %v156, %v260
    %v262 = vpop.f32.mrb[0].mxu0
    %263 = vmatprep.mubr.f32.mxu0 %v49
    %264 = vmatmul.mubr.f32.gmra.mrb[0].mxu0 %v48
    %v265 = vpop.f32.mrb[0].mxu0
    %v266 = vadd.f32 %v161, %v265
    %v267 = vpop.f32.mrb[0].mxu0
    %268 = vmatprep.mubr.f32.mxu0 %v53
    %269 = vmatmul.mubr.f32.gmra.mrb[0].mxu0 %v52
    %v270 = vpop.f32.mrb[0].mxu0
    %v271 = vadd.f32 %v166, %v270
    %v272 = vpop.f32.mrb[0].mxu0
    %273 = vmatprep.mubr.f32.mxu0 %v57
    %274 = vmatmul.mubr.f32.gmra.mrb[0].mxu0 %v56
    %v275 = vpop.f32.mrb[0].mxu0
    %v276 = vadd.f32 %v171, %v275
    %v277 = vpop.f32.mrb[0].mxu0
    %278 = vmatprep.mubr.f32.mxu0 %v61
    %279 = vmatmul.mubr.f32.gmra.mrb[0].mxu0 %v60
    %v280 = vpop.f32.mrb[0].mxu0
    %v281 = vadd.f32 %v176, %v280
    %v282 = vpop.f32.mrb[0].mxu0
    %283 = vmatprep.mubr.f32.mxu0 %v65
    %284 = vmatmul.mubr.f32.gmra.mrb[0].mxu0 %v64
    %v285 = vpop.f32.mrb[0].mxu0
    %v286 = vadd.f32 %v181, %v285
    %v287 = vpop.f32.mrb[0].mxu0
    %288 = vmatprep.mubr.f32.mxu0 %v69
    %289 = vmatmul.mubr.f32.gmra.mrb[0].mxu0 %v68
    %v290 = vpop.f32.mrb[0].mxu0
    %v291 = vadd.f32 %v186, %v290
    %v292 = vpop.f32.mrb[0].mxu0
    %293 = vmatprep.mubr.f32.mxu0 %v73
    %294 = vmatmul.mubr.f32.gmra.mrb[0].mxu0 %v72
    %v295 = vpop.f32.mrb[0].mxu0
    %v296 = vadd.f32 %v191, %v295
    %v297 = vpop.f32.mrb[0].mxu0
    %298 = vdwg.mxu0
    %vm299 = vcmask 130048
    %300 = vst.msk [vmem:[%s3] sm:$0xff] %vm299, %v261
    %301 = vst.msk [vmem:[%s3 + $0x8] sm:$0xff] %vm299, %v266
    %302 = vst.msk [vmem:[%s3 + $0x10] sm:$0xff] %vm299, %v271
    %303 = vst.msk [vmem:[%s3 + $0x18] sm:$0xff] %vm299, %v276
    %304 = vst.msk [vmem:[%s3 + $0x20] sm:$0xff] %vm299, %v281
    %305 = vst.msk [vmem:[%s3 + $0x28] sm:$0xff] %vm299, %v286
    %306 = vst.msk [vmem:[%s3 + $0x30] sm:$0xff] %vm299, %v291
    %307 = vst.msk [vmem:[%s3 + $0x38] sm:$0xff] %vm299, %v296
    // Predicated region
    $region22: #{logistic_regression_forward.1} parent=1 // pred_check
      _
    $region23: #{logistic_regression_forward.1} parent=1 // pred_check_branch
      %309 = sbr.rel (0) target = $region25
    $region24: #{logistic_regression_forward.1} parent=1 // pred_region
      _
    $region25: #{logistic_regression_forward.1} parent=1 // pred_fallthru
      _
    // Predicated region
    $region26: #{logistic_regression_forward.1} parent=1 // pred_check
      _
    $region27: #{logistic_regression_forward.1} parent=1 // pred_check_branch
      %311 = sbr.rel (0) target = $region29
    $region28: #{logistic_regression_forward.1} parent=1 // pred_region
      _
    $region29: #{logistic_regression_forward.1} parent=1 // pred_fallthru
      _
    %312 = vsyncpa [#allocation3], 1
    %313 = vsyncpa [#allocation5], 1

</llo_original>
